<compile_context>
chip_gen: v5e
topology: v5e:2x2
jax: 0.10.0
libtpu: 0.0.40
codegen_flags: <defaults>
</compile_context>

<pallas_src>
import functools
import math

import jax
import jax.numpy as jnp
from jax.experimental import pallas as pl
from jax.experimental.pallas import tpu as pltpu

_MIB = 1024 * 1024
# Conservative fallback (v7x per-TC VMEM) if hardware introspection fails.
_FALLBACK_VMEM_CAPACITY = 64 * _MIB


def _rmsnorm_kernel(x_ref, w_ref, o_ref, *, eps):
    # x_ref: (TILE_ROWS, DIM), w_ref: (1, DIM), o_ref: (TILE_ROWS, DIM)
    x32 = x_ref[...].astype(jnp.float32)                 # x.float()     (VPU)
    w32 = w_ref[...].astype(jnp.float32)                 # VMEM-resident weight
    ms = jnp.mean(x32 * x32, axis=-1, keepdims=True)     # row reduce    (XLU)
    inv = jax.lax.rsqrt(ms + eps)                        # rsqrt         (EUP)
    # Single fused f32 multiply chain, one final cast to the output dtype.
    o_ref[...] = (x32 * inv * w32).astype(o_ref.dtype)


def _vmem_capacity_bytes():
    """Physical VMEM of the current generation (128 MiB v5e/v6e, 64 MiB v7x TC)."""
    try:
        info = pltpu.get_tpu_info()
        cap = getattr(info, "vmem_capacity_bytes", None)
        if cap:
            return int(cap)
    except Exception:
        pass
    return _FALLBACK_VMEM_CAPACITY


def _vmem_plan(dim, in_itemsize, out_itemsize, num_in_buffers):
    """Return (vmem_limit_bytes, tiling_budget_bytes, per_row_bytes)."""
    cap = _vmem_capacity_bytes()
    # Scoped limit: 3/4 of physical, never above 96 MiB.
    vmem_limit = min(3 * cap // 4, 96 * _MIB)
    # Use ~2/3 of the scoped limit for pipeline buffers + temps so the
    # compiler keeps headroom for its own internal scratch (important on v7x).
    budget = 2 * vmem_limit // 3
    # Per-row VMEM footprint of one grid step:
    #   num_in_buffers x input tile   (multi-buffered input pipeline)
    # + 2              x output tile  (double-buffered output pipeline)
    # + 2              x f32 temps    (in-kernel f32 upcast of x + product)
    per_row = dim * (num_in_buffers * in_itemsize + 2 * out_itemsize + 2 * 4)
    return vmem_limit, budget, max(per_row, 1)


def _pick_tile_rows(rows, dim, dtype, budget_bytes, per_row_bytes):
    """Row tile: fill the VMEM budget, aligned to the dtype's sublane packing."""
    itemsize = jnp.dtype(dtype).itemsize
    packing = {1: 32, 2: 16, 4: 8}.get(itemsize, 8)       # sublane packing
    t = max(packing, budget_bytes // per_row_bytes)
    # Diminishing returns past ~16 MiB of input per step (roofline plateau).
    max_rows_by_bytes = max(packing, (16 * _MIB) // max(dim * itemsize, 1))
    t = min(t, max_rows_by_bytes)
    t = (t // packing) * packing                          # dense, unmasked stores
    if t >= rows:
        # One block covering the full row extent is always a legal block shape.
        return rows
    return max(t, packing)


def rmsnorm(x, weight, eps=1e-6, tile_rows=None):
    """RMSNorm over the last axis of x (any leading shape)."""
    orig_shape = x.shape
    dim = orig_shape[-1]
    rows = math.prod(orig_shape[:-1]) if len(orig_shape) > 1 else 1

    x2d = x.reshape(rows, dim)
    w2d = weight.reshape(1, dim)

    lane_dense = (dim % 128 == 0)
    # Third input buffer only on the lane-dense fast path; compute per tile is
    # a handful of VPU ops, so the extra buffer hides DMA jitter at tile edges.
    num_in_buffers = 3 if lane_dense else 2

    in_itemsize = jnp.dtype(x.dtype).itemsize
    out_itemsize = in_itemsize
    vmem_limit, budget, per_row = _vmem_plan(
        dim, in_itemsize, out_itemsize, num_in_buffers)

    if tile_rows is None:
        tile_rows = _pick_tile_rows(rows, dim, x.dtype, budget, per_row)

    # No host-side padding: cdiv grid + OOB block clipping for a ragged last
    # tile (rows are independent, so clipped-region garbage never leaks).
    grid = (pl.cdiv(rows, tile_rows),)

    x_spec = pl.BlockSpec((tile_rows, dim), lambda i: (i, 0))
    if lane_dense and num_in_buffers > 2:
        try:
            x_spec = pl.BlockSpec((tile_rows, dim), lambda i: (i, 0),
                                  pipeline_mode=pl.Buffered(num_in_buffers))
        except TypeError:
            # Older pipeline_mode-less BlockSpec: fall back to double buffering.
            x_spec = pl.BlockSpec((tile_rows, dim), lambda i: (i, 0))

    # NOTE: eps is baked in via partial -> each distinct eps recompiles (fine
    # for a module-level constant like PyTorch's self.eps).
    kernel = functools.partial(_rmsnorm_kernel, eps=float(eps))

    out = pl.pallas_call(
        kernel,
        out_shape=jax.ShapeDtypeStruct((rows, dim), x.dtype),
        grid_spec=pltpu.PrefetchScalarGridSpec(
            num_scalar_prefetch=0,
            grid=grid,
            in_specs=[
                x_spec,
                # Constant index map -> weight stays VMEM-resident across steps.
                pl.BlockSpec((1, dim), lambda i: (0, 0)),
            ],
            out_specs=pl.BlockSpec((tile_rows, dim), lambda i: (i, 0)),
        ),
        compiler_params=pltpu.CompilerParams(
            # TODO(synk): on v7x verify both TCs are active with "parallel";
            # otherwise switch this axis to pltpu.CORE_PARALLEL.
            dimension_semantics=("parallel",),
            vmem_limit_bytes=vmem_limit,
        ),
    )(x2d, w2d)

    return out.reshape(orig_shape)


def rmsnorm_reference(x, weight, eps=1e-6):
    # Mirrors: self.weight * self._norm(x.float()).type_as(x)
    xf = x.astype(jnp.float32)
    normed = xf * jax.lax.rsqrt(jnp.mean(xf * xf, axis=-1, keepdims=True) + eps)
    return (weight * normed.astype(x.dtype)).astype(x.dtype)


if __name__ == "__main__":
    key = jax.random.PRNGKey(0)
    batch, seq, hidden = 2, 8, 32

    x = jax.random.normal(key, (batch, seq, hidden), dtype=jnp.float32)
    # Deterministic parameter init: nn.Parameter(torch.ones(dim))
    weight = jnp.ones((hidden,), dtype=jnp.float32)

    out = rmsnorm(x, weight, eps=1e-6)
    out = jax.block_until_ready(out)

    ref = rmsnorm_reference(x, weight, eps=1e-6)
    assert out.shape == x.shape
    assert jnp.allclose(out, ref, atol=1e-5, rtol=1e-5), "mismatch vs reference"

    print("KERNEL_OK")
</pallas_src>

<mosaic_0001>
module attributes {stable_mosaic.version = 11 : i64} {
  func.func @_rmsnorm_kernel(%arg0: i32, %arg1: memref<16x32xf32, #tpu.memory_space<vmem>>, %arg2: memref<1x32xf32, #tpu.memory_space<vmem>>, %arg3: memref<16x32xf32, #tpu.memory_space<vmem>>) attributes {dimension_semantics = [#tpu.dimension_semantics<parallel>], iteration_bounds = array<i64: 1>, scalar_prefetch = 0 : i64, scratch_operands = 0 : i64, tpu.core_type = #tpu.core_type<tc>, window_params = [{transform_indices = @transform_0, window_bounds = array<i64: 16, 32>}, {pipeline_mode = #tpu.pipeline_mode<synchronous>, transform_indices = @transform_1, window_bounds = array<i64: 1, 32>}, {transform_indices = @transform_2, window_bounds = array<i64: 16, 32>}]} {
    %c0 = arith.constant 0 : index
    %c0_0 = arith.constant 0 : index
    %0 = vector.load %arg1[%c0, %c0_0] : memref<16x32xf32, #tpu.memory_space<vmem>>, vector<16x32xf32>
    %c0_1 = arith.constant 0 : index
    %c0_2 = arith.constant 0 : index
    %1 = vector.load %arg2[%c0_1, %c0_2] : memref<1x32xf32, #tpu.memory_space<vmem>>, vector<1x32xf32>
    %2 = arith.mulf %0, %0 : vector<16x32xf32>
    %cst = arith.constant dense<0.000000e+00> : vector<16xf32>
    %3 = vector.multi_reduction <add>, %2, %cst [1] : vector<16x32xf32> to vector<16xf32>
    %4 = vector.shape_cast %3 : vector<16xf32> to vector<16x1xf32>
    %cst_3 = arith.constant 3.200000e+01 : f32
    %5 = vector.broadcast %cst_3 : f32 to vector<16x1xf32>
    %6 = arith.divf %4, %5 : vector<16x1xf32>
    %cst_4 = arith.constant 9.99999997E-7 : f32
    %7 = vector.broadcast %cst_4 : f32 to vector<16x1xf32>
    %8 = arith.addf %6, %7 : vector<16x1xf32>
    %9 = math.rsqrt %8 : vector<16x1xf32>
    %10 = vector.broadcast %9 : vector<16x1xf32> to vector<16x32xf32>
    %11 = arith.mulf %0, %10 : vector<16x32xf32>
    %12 = vector.broadcast %1 : vector<1x32xf32> to vector<16x32xf32>
    %13 = arith.mulf %11, %12 : vector<16x32xf32>
    %c0_5 = arith.constant 0 : index
    %c0_6 = arith.constant 0 : index
    %14 = vector.load %arg3[%c0_5, %c0_6] : memref<16x32xf32, #tpu.memory_space<vmem>>, vector<16x32xf32>
    tpu.vector_store %arg3[%c0_5, %c0_6], %13 {strides = array<i32>} : memref<16x32xf32, #tpu.memory_space<vmem>>, vector<16x32xf32>,
    return
  }
  func.func @transform_0(%arg0: i32) -> (i32, i32) {
    %c0_i32 = arith.constant 0 : i32
    %c0_i32_0 = arith.constant 0 : i32
    return %arg0, %c0_i32 : i32, i32
  }
  func.func @transform_1(%arg0: i32) -> (i32, i32) {
    %c0_i32 = arith.constant 0 : i32
    %c0_i32_0 = arith.constant 0 : i32
    %c0_i32_1 = arith.constant 0 : i32
    return %c0_i32, %c0_i32_0 : i32, i32
  }
  func.func @transform_2(%arg0: i32) -> (i32, i32) {
    %c0_i32 = arith.constant 0 : i32
    %c0_i32_0 = arith.constant 0 : i32
    return %arg0, %c0_i32 : i32, i32
  }
}

</mosaic_0001>

<llo_original>
// kernel: tpu_custom_call.1
$region0: #{tpu_custom_call.1}
  #allocation0 [shape = 'u32[]', space=smem, size = 0x4, offset = 0x4, fixed_abs, tag = 'smem constant byte address 0x4 - core index']
  #allocation1 [shape = 'u32[72,128]{1,0:T(1,128)}', space=vmem, size = 0x9000, scoped, tag = 'internal scratch']
  %s0 = inlined_call_operand.hbm [shape: f32[16,32], index: 0, kind: input, shape index: {}]
  %s1 = inlined_call_operand.hbm [shape: f32[1,32], index: 1, kind: input, shape index: {}]
  %s2 = inlined_call_operand.hbm [shape: f32[16,32], index: 2, kind: output, shape index: {}]
  %s3 = sld [smem:[#allocation0]]
  $region26: #{tpu_custom_call.1} parent=0
    _
  %s5 = ssub.s32 1, %s3
  %s6 = scalar_select 0, %s5, %s3
  $region1: #{tpu_custom_call.1} parent=0
    #allocation2 [shape = 'u8[8192]{0}', space=vmem, size = 0x2000, scoped, tag = 'input window, operand 0, single buffered']
    #allocation3 [shape = 's32[1]{0}', space=sflag, size = 0x4, scoped, tag = 'scoped memory for tpu_custom_call.1']
    #allocation4 [shape = 's32[1]{0}', space=sflag, size = 0x4, scoped, tag = 'scoped memory for tpu_custom_call.1']
    #allocation5 [shape = 'u8[512]{0}', space=vmem, size = 0x400, scoped, tag = 'input window, operand 1, single buffered']
    #allocation6 [shape = 's32[1]{0}', space=sflag, size = 0x4, scoped, tag = 'scoped memory for tpu_custom_call.1']
    #allocation7 [shape = 'u8[8192]{0}', space=vmem, size = 0x2000, scoped, tag = 'output window, operand 0, single buffered']
    %7 = vsyncpa [#allocation3], 0
    %8 = vsyncpa [#allocation6], 0
    %9 = vsyncpa [#allocation4], 0
    // Predicated region
    $region2: #{tpu_custom_call.1} parent=1 // pred_check
      _
    $region3: #{tpu_custom_call.1} parent=1 // pred_check_branch
      %11 = sbr.rel (0) target = $region5
    $region4: #{tpu_custom_call.1} parent=1 // pred_region
      %13 = vsyncadd [#allocation3], 0
      %s14 = sshll.u32 %s0, 4
      %s15 = int_to_ptr.hbm [resolvable:$true] %s14
      %s16 = sshll.u32 [#allocation2], 4
      %s17 = int_to_ptr.vmem [resolvable:$true] %s16
      %22 = dma.hbm_to_vmem [thread:$0]  %s15, 256, %s17, [#allocation3], 128, 128, 8
    $region5: #{tpu_custom_call.1} parent=1 // pred_fallthru
      _
    // Predicated region
    $region6: #{tpu_custom_call.1} parent=1 // pred_check
      _
    $region7: #{tpu_custom_call.1} parent=1 // pred_check_branch
      %24 = sbr.rel (0) target = $region9
    $region8: #{tpu_custom_call.1} parent=1 // pred_region
      %26 = vsyncadd [#allocation6], 0
      %s28 = sshll.u32 %s1, 4
      %s29 = int_to_ptr.hbm [resolvable:$true] %s28
      %s30 = sshll.u32 [#allocation5], 4
      %s31 = int_to_ptr.vmem [resolvable:$true] %s30
      %33 = dma.hbm_to_vmem [thread:$0]  %s29, 16, %s31, [#allocation6]
    $region9: #{tpu_custom_call.1} parent=1 // pred_fallthru
      _
    // Predicated region
    $region10: #{tpu_custom_call.1} parent=1 // pred_check
      _
    $region11: #{tpu_custom_call.1} parent=1 // pred_check_branch
      %35 = sbr.rel (0) target = $region13
    $region12: #{tpu_custom_call.1} parent=1 // pred_region
      %37 = dma.done [#allocation3], 256
    $region13: #{tpu_custom_call.1} parent=1 // pred_fallthru
      _
    // Predicated region
    $region14: #{tpu_custom_call.1} parent=1 // pred_check
      _
    $region15: #{tpu_custom_call.1} parent=1 // pred_check_branch
      %39 = sbr.rel (0) target = $region17
    $region16: #{tpu_custom_call.1} parent=1 // pred_region
      %41 = dma.done [#allocation6], 16
    $region17: #{tpu_custom_call.1} parent=1 // pred_fallthru
      _
    %v42 = vld [vmem:[#allocation2] sm:$0xff]
    %v43 = vld [vmem:[#allocation2 + $0x8] sm:$0xff]
    %v44 = vld [vmem:[#allocation5] sm:$0x1]
    %v45 = vmul.f32 %v42, %v42
    %v46 = vmul.f32 %v43, %v43
    %vm47 = vcmask 261120
    %v48 = vsel %vm47, %v45, 0.0
    %49 = vadd.xlane.f32.xlu0 %v48
    %v50 = vpop.xlane.xlu0 %49
    %v51 = vsel %vm47, %v46, 0.0
    %52 = vadd.xlane.f32.xlu0 %v51
    %v53 = vpop.xlane.xlu0 %52
    %v54 = vrcp.pop 32.0
    %v55 = vmul.f32 32.0, %v54
    %v56 = vsub.f32 1.0, %v55
    %v57 = vmul.f32 %v54, %v56
    %v58 = vadd.f32 %v54, %v57
    %vm59 = vweird.f32 %v54
    %v60 = vsel %vm59, %v54, %v58
    %v61 = vmul.f32 %v50, %v60
    %v62 = vmul.f32 %v53, %v60
    %v63 = vadd.f32 %v61, 1e-06
    %v64 = vadd.f32 %v62, 1e-06
    %v65 = vrsqrt.pop %v63
    %v66 = vmul.f32 %v65, %v63
    %v67 = vmul.f32 %v66, %v65
    %v68 = vmul.f32 0.5, %v67
    %v69 = vsub.f32 1.5, %v68
    %v70 = vmul.f32 %v65, %v69
    %vm71 = vweird.f32 %v63
    %vm72 = vweird.f32 %v65
    %vm73 = vmor %vm71, %vm72
    %v74 = vsel %vm73, %v65, %v70
    %v75 = vrsqrt.pop %v64
    %v76 = vmul.f32 %v75, %v64
    %v77 = vmul.f32 %v76, %v75
    %v78 = vmul.f32 0.5, %v77
    %v79 = vsub.f32 1.5, %v78
    %v80 = vmul.f32 %v75, %v79
    %vm81 = vweird.f32 %v64
    %vm82 = vweird.f32 %v75
    %vm83 = vmor %vm81, %vm82
    %v84 = vsel %vm83, %v75, %v80
    %v85 = vmul.f32 %v42, %v74
    %v86 = vmul.f32 %v43, %v84
    %v88 = vperm.slane %v44, 0
    %v90 = vmul.f32 %v85, %v88
    %v91 = vmul.f32 %v86, %v88
    %92 = vst.msk [vmem:[#allocation7] sm:$0xff] %vm47, %v90
    %93 = vst.msk [vmem:[#allocation7 + $0x8] sm:$0xff] %vm47, %v91
    // Predicated region
    $region18: #{tpu_custom_call.1} parent=1 // pred_check
      _
    $region19: #{tpu_custom_call.1} parent=1 // pred_check_branch
      %95 = sbr.rel (0) target = $region21
    $region20: #{tpu_custom_call.1} parent=1 // pred_region
      %97 = vsyncadd [#allocation4], 0
      %s98 = sshll.u32 [#allocation7], 4
      %s99 = int_to_ptr.vmem [resolvable:$true] %s98
      %s100 = sshll.u32 %s2, 4
      %s101 = int_to_ptr.hbm [resolvable:$true] %s100
      %106 = dma.vmem_to_hbm [thread:$0]  %s99, 256, %s101, [#allocation4], 128, 128, 8
    $region21: #{tpu_custom_call.1} parent=1 // pred_fallthru
      _
    // Predicated region
    $region22: #{tpu_custom_call.1} parent=1 // pred_check
      _
    $region23: #{tpu_custom_call.1} parent=1 // pred_check_branch
      %108 = sbr.rel (0) target = $region25
    $region24: #{tpu_custom_call.1} parent=1 // pred_region
      %110 = dma.done [#allocation4], 256
    $region25: #{tpu_custom_call.1} parent=1 // pred_fallthru
      _
    %111 = vsyncpa [#allocation3], 1
    %112 = vsyncpa [#allocation6], 1
    %113 = vsyncpa [#allocation4], 1

</llo_original>
